<compile_context>
chip_gen: v5e
topology: v5e:2x2
jax: 0.10.0
libtpu: 0.0.40
codegen_flags: <defaults>
</compile_context>

<pallas_src>
import functools

import jax
import jax.numpy as jnp
import numpy as np
from jax import lax
from jax.experimental import pallas as pl
from jax.experimental.pallas import tpu as pltpu

EPS = 1e-5            # nn.InstanceNorm1d default eps
SLOPE = 0.2           # LeakyReLU negative slope used throughout the Decoder
VMEM_LIMIT = 48 * 1024 * 1024   # < 64 MiB physical on v7x; raises v5e's 16 MiB default


# ----------------------------------------------------------------------------
# In-kernel helpers
# ----------------------------------------------------------------------------
def _in_lrelu(x, eps, slope):
    """InstanceNorm1d (biased var, no affine) + LeakyReLU on a (C, L) tile.

    Two-pass statistics: mean, then E[(x - mean)^2] (review: avoid cancellation).
    """
    L = x.shape[1]
    inv_l = 1.0 / L
    mean = jnp.sum(x, axis=1, keepdims=True) * inv_l
    diff = x - mean
    var = jnp.sum(diff * diff, axis=1, keepdims=True) * inv_l
    xn = diff * lax.rsqrt(var + eps)
    return jnp.where(xn >= 0, xn, slope * xn)


def _reflect_pad_lanes(a, d):
    """Reflect-pad a (C, L) tile by d columns each side along the lane axis."""
    if d == 0:
        return a
    L = a.shape[1]
    left = [a[:, d - j: d - j + 1] for j in range(d)]          # a[d], ..., a[1]
    right = [a[:, L - 2 - j: L - 1 - j] for j in range(d)]     # a[L-2], ..., a[L-1-d]
    return jnp.concatenate(left + [a] + right, axis=1)


# ----------------------------------------------------------------------------
# Pallas kernels
# ----------------------------------------------------------------------------
def _upsample_kernel(x_ref, w_ref, b_ref, o_ref, *, eps, slope):
    # x_ref: (1, Cin, L) f32 or bf16
    # w_ref: (r*Cout, 3*Cin) bf16  rows phase-major (b, co); cols [prev|cur|next]xCin
    # b_ref: (r*Cout, 1) f32
    # o_ref: (1, r*Cout, L) bf16 with o[0, b*Cout+co, a] = y[co, a*r + b]
    x = x_ref[0].astype(jnp.float32)
    cin, L = x.shape
    a = _in_lrelu(x, eps, slope)
    zero = jnp.zeros((cin, 1), jnp.float32)
    az = jnp.concatenate([zero, a, zero], axis=1)                       # (Cin, L+2)
    stacked = jnp.concatenate(
        [az[:, 0:L], az[:, 1:1 + L], az[:, 2:2 + L]], axis=0)           # (3Cin, L)
    out = jnp.dot(w_ref[...], stacked.astype(jnp.bfloat16),
                  preferred_element_type=jnp.float32) + b_ref[...]
    o_ref[0] = out.astype(o_ref.dtype)


def _res_chain_kernel(*refs, dilations, eps, slope):
    # Whole chain of ResnetBlocks for one upsample stage, fused.  The (C, L)
    # activation stays in VMEM/vregs across blocks; only the chain in/out hit HBM.
    # refs = [x_ref, (w1, b1, w23, b23) per block ..., o_ref]
    #   x_ref : (1, C, L) bf16/f32
    #   w1    : (C, 3*C) bf16  tap-major ([k0|k1|k2] x Cin)
    #   b1    : (C, 1) f32
    #   w23   : (C, 2*C) bf16  ([w_conv1x1 | w_shortcut1x1])
    #   b23   : (C, 1) f32     (b_conv1x1 + b_shortcut1x1)
    #   o_ref : (1, C, L) bf16
    x_ref = refs[0]
    o_ref = refs[-1]
    x = x_ref[0].astype(jnp.float32)
    C, L = x.shape
    for j, d in enumerate(dilations):
        w1, b1, w23, b23 = refs[1 + 4 * j: 5 + 4 * j]
        a = _in_lrelu(x, eps, slope)
        ap = _reflect_pad_lanes(a, d)                                   # (C, L+2d)
        stacked = jnp.concatenate(
            [ap[:, k * d: k * d + L] for k in range(3)], axis=0)        # (3C, L)
        h = jnp.dot(w1[...], stacked.astype(jnp.bfloat16),
                    preferred_element_type=jnp.float32) + b1[...]
        hb = _in_lrelu(h, eps, slope)
        comb = jnp.concatenate([hb, x], axis=0)                         # (2C, L)
        x = jnp.dot(w23[...], comb.astype(jnp.bfloat16),
                    preferred_element_type=jnp.float32) + b23[...]
    o_ref[0] = x.astype(o_ref.dtype)


def _final_kernel(x_ref, w_ref, b_ref, o_ref, *, eps, slope):
    # IN + LeakyReLU + Conv1d(C -> 1, k=7, reflect pad 3) + tanh, on the VPU.
    # x_ref: (1, C, L) bf16; w_ref: (C, 7) f32; b_ref: (1, 1) f32; o_ref: (1, 1, L) f32
    x = x_ref[0].astype(jnp.float32)
    C, L = x.shape
    a = _in_lrelu(x, eps, slope)
    ap = _reflect_pad_lanes(a, 3)                                       # (C, L+6)
    w = w_ref[...]
    acc = ap[:, 0:L] * w[:, 0:1]
    for k in range(1, 7):                                               # 7*C MACs/sample
        acc = acc + ap[:, k:k + L] * w[:, k:k + 1]
    out = jnp.sum(acc, axis=0, keepdims=True) + b_ref[...]              # (1, L)
    o_ref[0] = jnp.tanh(out).astype(o_ref.dtype)


# ----------------------------------------------------------------------------
# One-time parameter preprocessing (hoisted out of the forward pass)
# ----------------------------------------------------------------------------
def _polyphase_weights(wt, bt, r):
    """ConvTranspose1d(K=2r, stride=r, pad=r//2+r%2, out_pad=r%2) as polyphase.

    Output phase b (t = a*r + b) uses taps (phi, phi + r), phi = (b+p) % r,
    applied to x[a+carry] and x[a+carry-1], carry = (b+p)//r in {0, 1}.
    """
    cin, cout, K = wt.shape
    p = r // 2 + r % 2
    assert K == 2 * r
    zeros = jnp.zeros((cout, cin), jnp.float32)
    blocks = []
    for b in range(r):
        phi = (b + p) % r
        carry = (b + p) // r
        w_cur = wt[:, :, phi].T            # multiplies x[a + carry]
        w_prev = wt[:, :, phi + r].T       # multiplies x[a + carry - 1]
        if carry == 0:   # cur slot = x[a], prev slot = x[a-1]
            wb = jnp.concatenate([w_prev, w_cur, zeros], axis=1)
        else:            # next slot = x[a+1], cur slot = x[a]
            wb = jnp.concatenate([zeros, w_prev, w_cur], axis=1)
        blocks.append(wb)
    w_all = jnp.concatenate(blocks, axis=0).astype(jnp.bfloat16)        # (r*Cout, 3*Cin)
    b_all = jnp.tile(bt, r).reshape(r * cout, 1).astype(jnp.float32)
    return w_all, b_all


def prepare_decoder_params(params):
    prep = {"stages": []}
    for stage in params["stages"]:
        r = stage["ratio"]
        cin, cout, _ = stage["wt"].shape
        w_all, b_all = _polyphase_weights(stage["wt"], stage["bt"], r)
        res = []
        for rb in stage["res"]:
            C = cout
            w1f = jnp.transpose(rb["w1"], (0, 2, 1)).reshape(C, 3 * C).astype(jnp.bfloat16)
            b1f = rb["b1"].reshape(C, 1).astype(jnp.float32)
            w23f = jnp.concatenate([rb["w2"][:, :, 0], rb["ws"][:, :, 0]],
                                   axis=1).astype(jnp.bfloat16)
            b23f = (rb["b2"] + rb["bs"]).reshape(C, 1).astype(jnp.float32)
            res.append({"dilation": int(rb["dilation"]),
                        "w1f": w1f, "b1f": b1f, "w23f": w23f, "b23f": b23f})
        prep["stages"].append({"ratio": int(r), "cin": int(cin), "cout": int(cout),
                               "w_all": w_all, "b_all": b_all, "res": res})
    prep["wf"] = params["wf"][0].astype(jnp.float32)          # (C_last, 7)
    prep["bf"] = params["bf"].reshape(1, 1).astype(jnp.float32)
    return prep


# ----------------------------------------------------------------------------
# Wrappers (pallas_call + small JAX glue)
# ----------------------------------------------------------------------------
def _cost(flops, transcendentals, bytes_accessed):
    return pl.CostEstimate(flops=int(flops), transcendentals=int(transcendentals),
                           bytes_accessed=int(bytes_accessed))


def _cparams():
    return pltpu.CompilerParams(dimension_semantics=("parallel",),
                                vmem_limit_bytes=VMEM_LIMIT)


def upsample_stage(x, st):
    """IN + LReLU + polyphase ConvTranspose1d; returns natural-order bf16 (N, Cout, L*r)."""
    N, Cin, L = x.shape
    r, Cout = st["ratio"], st["cout"]
    flops = N * (2 * (r * Cout) * (3 * Cin) * L + 10 * Cin * L)
    bytes_acc = (N * Cin * L * x.dtype.itemsize + (r * Cout) * (3 * Cin) * 2 +
                 (r * Cout) * 4 + N * (r * Cout) * L * 2)
    out = pl.pallas_call(
        functools.partial(_upsample_kernel, eps=EPS, slope=SLOPE),
        out_shape=jax.ShapeDtypeStruct((N, r * Cout, L), jnp.bfloat16),
        grid=(N,),
        in_specs=[pl.BlockSpec((1, Cin, L), lambda n: (n, 0, 0)),
                  pl.BlockSpec((r * Cout, 3 * Cin), lambda n: (0, 0)),
                  pl.BlockSpec((r * Cout, 1), lambda n: (0, 0))],
        out_specs=pl.BlockSpec((1, r * Cout, L), lambda n: (n, 0, 0)),
        compiler_params=_cparams(),
        cost_estimate=_cost(flops, N * Cin, bytes_acc),
    )(x, st["w_all"], st["b_all"])
    # Phase-major -> natural order (bf16, so half the previous transpose traffic).
    # TODO(synk): move this interleave inside the kernel to drop the HBM pass.
    return out.reshape(N, r, Cout, L).transpose(0, 2, 3, 1).reshape(N, Cout, L * r)


def resnet_chain(x, st):
    """All ResnetBlocks of one stage fused into a single pallas_call."""
    N, C, L = x.shape
    res = st["res"]
    if not res:
        return x
    dilations = tuple(rb["dilation"] for rb in res)
    assert max(dilations) < L, "reflect padding requires L > dilation"

    weights = []
    in_specs = [pl.BlockSpec((1, C, L), lambda n: (n, 0, 0))]
    for rb in res:
        weights += [rb["w1f"], rb["b1f"], rb["w23f"], rb["b23f"]]
        in_specs += [pl.BlockSpec((C, 3 * C), lambda n: (0, 0)),
                     pl.BlockSpec((C, 1), lambda n: (0, 0)),
                     pl.BlockSpec((C, 2 * C), lambda n: (0, 0)),
                     pl.BlockSpec((C, 1), lambda n: (0, 0))]

    nb = len(res)
    flops = N * nb * (2 * C * 3 * C * L + 2 * C * 2 * C * L + 20 * C * L)
    bytes_acc = (2 * N * C * L * 2 + nb * (C * 3 * C * 2 + C * 2 * C * 2 + 2 * C * 4))
    return pl.pallas_call(
        functools.partial(_res_chain_kernel, dilations=dilations, eps=EPS, slope=SLOPE),
        out_shape=jax.ShapeDtypeStruct((N, C, L), jnp.bfloat16),
        grid=(N,),
        in_specs=in_specs,
        out_specs=pl.BlockSpec((1, C, L), lambda n: (n, 0, 0)),
        compiler_params=_cparams(),
        cost_estimate=_cost(flops, N * nb * 2 * C, bytes_acc),
    )(x, *weights)


def final_layer(x, wf, bf):
    N, C, L = x.shape
    flops = N * (15 * C * L + 10 * C * L)
    bytes_acc = N * C * L * x.dtype.itemsize + C * 7 * 4 + N * L * 4
    return pl.pallas_call(
        functools.partial(_final_kernel, eps=EPS, slope=SLOPE),
        out_shape=jax.ShapeDtypeStruct((N, 1, L), jnp.float32),
        grid=(N,),
        in_specs=[pl.BlockSpec((1, C, L), lambda n: (n, 0, 0)),
                  pl.BlockSpec((C, 7), lambda n: (0, 0)),
                  pl.BlockSpec((1, 1), lambda n: (0, 0))],
        out_specs=pl.BlockSpec((1, 1, L), lambda n: (n, 0, 0)),
        compiler_params=_cparams(),
        cost_estimate=_cost(flops, N * (C + L), bytes_acc),
    )(x, wf, bf)


# ----------------------------------------------------------------------------
# Decoder parameters + forward
# ----------------------------------------------------------------------------
def init_params(key, upsample_ratios, channel_sizes, n_res_blocks):
    keys = iter(jax.random.split(key, 256))

    def winit(shape, fan_in):
        bound = 1.0 / float(np.sqrt(fan_in))
        return jax.random.uniform(next(keys), shape, jnp.float32, -bound, bound)

    params = {"stages": []}
    for i, r in enumerate(upsample_ratios):
        cin, cout = channel_sizes[i], channel_sizes[i + 1]
        K = 2 * r
        stage = {
            "ratio": r,
            "wt": winit((cin, cout, K), cin * K),     # ConvTranspose1d: (Cin, Cout, K)
            "bt": winit((cout,), cin * K),
            "res": [],
        }
        for j in range(n_res_blocks):
            d = 3 ** j
            stage["res"].append({
                "dilation": d,
                "w1": winit((cout, cout, 3), cout * 3),
                "b1": winit((cout,), cout * 3),
                "w2": winit((cout, cout, 1), cout),
                "b2": winit((cout,), cout),
                "ws": winit((cout, cout, 1), cout),
                "bs": winit((cout,), cout),
            })
        params["stages"].append(stage)
    clast = channel_sizes[-1]
    params["wf"] = winit((1, clast, 7), clast * 7)
    params["bf"] = winit((1,), clast * 7)
    return params


def decoder_forward(prep, x):
    for st in prep["stages"]:
        x = upsample_stage(x, st)      # bf16 (N, Cout, L*r), natural order
        x = resnet_chain(x, st)        # bf16, fused residual chain
    return final_layer(x, prep["wf"], prep["bf"])   # f32


# ----------------------------------------------------------------------------
# Pure-JAX reference (correctness check only).  It mirrors the kernel numerics:
# MXU/conv operands are rounded through bf16 (products stay exact in f32, so
# no bf16 x bf16 dot is ever issued -> runs on any backend), inter-kernel
# activations are rounded to bf16 at the same points the kernels store them,
# and the tail conv stays f32 like the kernel's VPU path.
# ----------------------------------------------------------------------------
def _bf16_round(x):
    return x.astype(jnp.bfloat16).astype(jnp.float32)


def ref_inorm_lrelu(x):
    mean = x.mean(axis=2, keepdims=True)
    diff = x - mean
    var = (diff * diff).mean(axis=2, keepdims=True)
    xn = diff * lax.rsqrt(var + EPS)
    return jnp.where(xn >= 0, xn, SLOPE * xn)


def ref_conv1d(x, w, b, dilation=1, padding=0, reflect=False, quant=True):
    if padding > 0:
        x = jnp.pad(x, ((0, 0), (0, 0), (padding, padding)),
                    mode="reflect" if reflect else "constant")
    if quant:
        x, w = _bf16_round(x), _bf16_round(w)
    y = lax.conv_general_dilated(x, w, (1,), "VALID", rhs_dilation=(dilation,),
                                 dimension_numbers=("NCH", "OIH", "NCH"),
                                 preferred_element_type=jnp.float32)
    return y + b[None, :, None]


def ref_conv_transpose1d(x, w, b, stride, padding, output_padding):
    N, Cin, L = x.shape
    _, Cout, K = w.shape
    xq, wq = _bf16_round(x), _bf16_round(w)
    Lfull = (L - 1) * stride + K
    y = jnp.zeros((N, Cout, Lfull), jnp.float32)
    for k in range(K):
        contrib = jnp.einsum("ncl,co->nol", xq, wq[:, :, k])
        y = y.at[:, :, k:k + (L - 1) * stride + 1:stride].add(contrib)
    y = jnp.pad(y, ((0, 0), (0, 0), (0, output_padding)))
    Lout = (L - 1) * stride - 2 * padding + K + output_padding
    y = y[:, :, padding:padding + Lout]
    return y + b[None, :, None]


def ref_decoder_forward(params, x):
    for stage in params["stages"]:
        r = stage["ratio"]
        h = ref_inorm_lrelu(x)
        x = ref_conv_transpose1d(h, stage["wt"], stage["bt"], stride=r,
                                 padding=r // 2 + r % 2, output_padding=r % 2)
        x = _bf16_round(x)                       # upsample kernel stores bf16
        for rb in stage["res"]:
            d = rb["dilation"]
            h = ref_inorm_lrelu(x)
            h = ref_conv1d(h, rb["w1"], rb["b1"], dilation=d, padding=d, reflect=True)
            h = ref_inorm_lrelu(h)
            x = (ref_conv1d(h, rb["w2"], rb["b2"]) +
                 ref_conv1d(x, rb["ws"], rb["bs"]))
        x = _bf16_round(x)                       # fused res-chain kernel stores bf16
    x = ref_inorm_lrelu(x)
    x = ref_conv1d(x, params["wf"], params["bf"], dilation=1, padding=3,
                   reflect=True, quant=False)
    return jnp.tanh(x)


# ----------------------------------------------------------------------------
if __name__ == "__main__":
    upsample_ratios = [2, 2]
    channel_sizes = [32, 16, 8]
    n_res_blocks = 2                    # dilations 1, 3 per stage
    N, L = 2, 16

    key = jax.random.PRNGKey(0)
    pkey, xkey = jax.random.split(key)
    params = init_params(pkey, upsample_ratios, channel_sizes, n_res_blocks)
    prep = prepare_decoder_params(params)     # one-time weight preprocessing
    x = jax.random.normal(xkey, (N, channel_sizes[0], L), jnp.float32)

    out = jax.block_until_ready(decoder_forward(prep, x))

    expected_L = L
    for r in upsample_ratios:
        expected_L *= r
    assert out.shape == (N, 1, expected_L), out.shape

    ref = jax.block_until_ready(ref_decoder_forward(params, x))
    # Both paths use bf16-rounded matmul operands with f32 accumulation and
    # bf16 activation storage at the same boundaries; remaining differences
    # are accumulation order and transcendental implementations.
    np.testing.assert_allclose(np.asarray(out), np.asarray(ref),
                               rtol=1e-2, atol=1e-2)
    print("KERNEL_OK")
</pallas_src>

<mosaic_0001>
module attributes {stable_mosaic.version = 11 : i64} {
  func.func @_upsample_kernel(%arg0: i32, %arg1: memref<1x32x16xf32, #tpu.memory_space<vmem>>, %arg2: memref<32x96xbf16, #tpu.memory_space<vmem>>, %arg3: memref<32x1xf32, #tpu.memory_space<vmem>>, %arg4: memref<1x32x16xbf16, #tpu.memory_space<vmem>>) attributes {dimension_semantics = [#tpu.dimension_semantics<parallel>], iteration_bounds = array<i64: 2>, scalar_prefetch = 0 : i64, scratch_operands = 0 : i64, tpu.core_type = #tpu.core_type<tc>, window_params = [{transform_indices = @transform_0, window_bounds = array<i64: 1, 32, 16>}, {pipeline_mode = #tpu.pipeline_mode<synchronous>, transform_indices = @transform_1, window_bounds = array<i64: 32, 96>}, {pipeline_mode = #tpu.pipeline_mode<synchronous>, transform_indices = @transform_2, window_bounds = array<i64: 32, 1>}, {transform_indices = @transform_3, window_bounds = array<i64: 1, 32, 16>}]} {
    %c0 = arith.constant 0 : index
    %c0_0 = arith.constant 0 : index
    %c0_1 = arith.constant 0 : index
    %0 = vector.load %arg1[%c0, %c0_0, %c0_1] : memref<1x32x16xf32, #tpu.memory_space<vmem>>, vector<1x32x16xf32>
    %1 = vector.shape_cast %0 : vector<1x32x16xf32> to vector<32x16xf32>
    %cst = arith.constant dense<0.000000e+00> : vector<32xf32>
    %2 = vector.multi_reduction <add>, %1, %cst [1] : vector<32x16xf32> to vector<32xf32>
    %3 = vector.shape_cast %2 : vector<32xf32> to vector<32x1xf32>
    %cst_2 = arith.constant 6.250000e-02 : f32
    %4 = vector.broadcast %cst_2 : f32 to vector<32x1xf32>
    %5 = arith.mulf %3, %4 : vector<32x1xf32>
    %6 = vector.broadcast %5 : vector<32x1xf32> to vector<32x16xf32>
    %7 = arith.subf %1, %6 : vector<32x16xf32>
    %8 = arith.mulf %7, %7 : vector<32x16xf32>
    %cst_3 = arith.constant dense<0.000000e+00> : vector<32xf32>
    %9 = vector.multi_reduction <add>, %8, %cst_3 [1] : vector<32x16xf32> to vector<32xf32>
    %10 = vector.shape_cast %9 : vector<32xf32> to vector<32x1xf32>
    %cst_4 = arith.constant 6.250000e-02 : f32
    %11 = vector.broadcast %cst_4 : f32 to vector<32x1xf32>
    %12 = arith.mulf %10, %11 : vector<32x1xf32>
    %cst_5 = arith.constant 9.99999974E-6 : f32
    %13 = vector.broadcast %cst_5 : f32 to vector<32x1xf32>
    %14 = arith.addf %12, %13 : vector<32x1xf32>
    %15 = math.rsqrt %14 : vector<32x1xf32>
    %16 = vector.broadcast %15 : vector<32x1xf32> to vector<32x16xf32>
    %17 = arith.mulf %7, %16 : vector<32x16xf32>
    %cst_6 = arith.constant 0.000000e+00 : f32
    %18 = vector.broadcast %cst_6 : f32 to vector<32x16xf32>
    %19 = arith.cmpf oge, %17, %18 : vector<32x16xf32>
    %cst_7 = arith.constant 2.000000e-01 : f32
    %20 = vector.broadcast %cst_7 : f32 to vector<32x16xf32>
    %21 = arith.mulf %20, %17 : vector<32x16xf32>
    %22 = arith.select %19, %17, %21 : vector<32x16xi1>, vector<32x16xf32>
    %cst_8 = arith.constant 0.000000e+00 : f32
    %23 = vector.broadcast %cst_8 : f32 to vector<32x1xf32>
    %24 = tpu.concatenate %23, %22, %23 in 1 : vector<32x1xf32>, vector<32x16xf32>, vector<32x1xf32> -> vector<32x18xf32>
    %25 = vector.extract_strided_slice %24 {offsets = [0, 0], sizes = [32, 16], strides = [1, 1]} : vector<32x18xf32> to vector<32x16xf32>
    %26 = vector.extract_strided_slice %24 {offsets = [0, 1], sizes = [32, 16], strides = [1, 1]} : vector<32x18xf32> to vector<32x16xf32>
    %27 = vector.extract_strided_slice %24 {offsets = [0, 2], sizes = [32, 16], strides = [1, 1]} : vector<32x18xf32> to vector<32x16xf32>
    %28 = tpu.concatenate %25, %26, %27 in 0 : vector<32x16xf32>, vector<32x16xf32>, vector<32x16xf32> -> vector<96x16xf32>
    %c0_9 = arith.constant 0 : index
    %c0_10 = arith.constant 0 : index
    %29 = vector.load %arg2[%c0_9, %c0_10] : memref<32x96xbf16, #tpu.memory_space<vmem>>, vector<32x96xbf16>
    %30 = arith.truncf %28 : vector<96x16xf32> to vector<96x16xbf16>
    %cst_11 = arith.constant dense<0.000000e+00> : vector<32x16xf32>
    %31 = tpu.matmul %29, %30, %cst_11 {dimension_numbers = #tpu.dot_dimension_numbers<[1], [0], [0], [1], [0, 0, 1, 1], [], []>} : vector<32x96xbf16>, vector<96x16xbf16>, vector<32x16xf32> -> vector<32x16xf32>
    %c0_12 = arith.constant 0 : index
    %c0_13 = arith.constant 0 : index
    %32 = vector.load %arg3[%c0_12, %c0_13] : memref<32x1xf32, #tpu.memory_space<vmem>>, vector<32x1xf32>
    %33 = vector.broadcast %32 : vector<32x1xf32> to vector<32x16xf32>
    %34 = arith.addf %31, %33 : vector<32x16xf32>
    %35 = arith.truncf %34 : vector<32x16xf32> to vector<32x16xbf16>
    %c0_14 = arith.constant 0 : index
    %c0_15 = arith.constant 0 : index
    %c0_16 = arith.constant 0 : index
    %36 = vector.load %arg4[%c0_14, %c0_15, %c0_16] : memref<1x32x16xbf16, #tpu.memory_space<vmem>>, vector<1x32x16xbf16>
    %37 = vector.shape_cast %36 : vector<1x32x16xbf16> to vector<32x16xbf16>
    %38 = vector.shape_cast %35 : vector<32x16xbf16> to vector<1x32x16xbf16>
    tpu.vector_store %arg4[%c0_14, %c0_15, %c0_16], %38 {strides = array<i32>} : memref<1x32x16xbf16, #tpu.memory_space<vmem>>, vector<1x32x16xbf16>,
    return
  }
  func.func @transform_0(%arg0: i32) -> (i32, i32, i32) {
    %c0_i32 = arith.constant 0 : i32
    %c0_i32_0 = arith.constant 0 : i32
    %c0_i32_1 = arith.constant 0 : i32
    return %arg0, %c0_i32, %c0_i32_0 : i32, i32, i32
  }
  func.func @transform_1(%arg0: i32) -> (i32, i32) {
    %c0_i32 = arith.constant 0 : i32
    %c0_i32_0 = arith.constant 0 : i32
    %c0_i32_1 = arith.constant 0 : i32
    return %c0_i32, %c0_i32_0 : i32, i32
  }
  func.func @transform_2(%arg0: i32) -> (i32, i32) {
    %c0_i32 = arith.constant 0 : i32
    %c0_i32_0 = arith.constant 0 : i32
    %c0_i32_1 = arith.constant 0 : i32
    return %c0_i32, %c0_i32_0 : i32, i32
  }
  func.func @transform_3(%arg0: i32) -> (i32, i32, i32) {
    %c0_i32 = arith.constant 0 : i32
    %c0_i32_0 = arith.constant 0 : i32
    %c0_i32_1 = arith.constant 0 : i32
    return %arg0, %c0_i32, %c0_i32_0 : i32, i32, i32
  }
}

</mosaic_0001>

<llo_original>
// kernel: tpu_custom_call.1
$region0: #{tpu_custom_call.1}
  #allocation0 [shape = 'u32[]', space=smem, size = 0x4, offset = 0x4, fixed_abs, tag = 'smem constant byte address 0x4 - core index']
  #allocation1 [shape = 'u32[72,128]{1,0:T(1,128)}', space=vmem, size = 0x9000, scoped, tag = 'internal scratch']
  %s0 = inlined_call_operand.vmem [shape: f32[2,32,16], index: 0, kind: input, shape index: {}]
  %s1 = inlined_call_operand.vmem [shape: bf16[32,96], index: 1, kind: input, shape index: {}]
  %s2 = inlined_call_operand.vmem [shape: f32[32,1], index: 2, kind: input, shape index: {}]
  %s3 = inlined_call_operand.vmem [shape: bf16[2,32,16], index: 3, kind: output, shape index: {}]
  %s4 = sld [smem:[#allocation0]]
  $region45: #{tpu_custom_call.1} parent=0
    _
  %s6 = ssub.s32 1, %s4
  %s7 = scalar_select 0, %s6, %s4
  loop: start=0, step=1, limit=4
  $region2: #{tpu_custom_call.1} parent=0 // loop_pre_header
    _
  $region3: #{tpu_custom_call.1} parent=0 // loop_header
    %s9 = sphi 0, %s13
    %p10 = scmp.ge.s32.totalorder %s9, 4
    %s19 = sphi 0, %s21
    %s22 = sphi 0, %s19
    %s23 = sphi 0, %s22
    %s39 = sphi 0, %s23
    %s43 = sphi 0, %s43
    %s45 = sphi 0, %s43
    %s46 = sphi 0, %s45
    %s60 = sphi 0, %s46
    %s64 = sphi 0, %s64
    %s66 = sphi 0, %s64
    %s67 = sphi 0, %s66
    %s81 = sphi 0, %s67
    %s87 = sphi 0, %s89
    %s90 = sphi 0, %s87
    %s91 = sphi 0, %s90
    %s107 = sphi 0, %s91
  $region4: #{tpu_custom_call.1} parent=0 // loop_header_branch
    %12 = sbr.rel (%p10) target = $region8
  $region5: #{tpu_custom_call.1} parent=0 // loop_body
    %s14 = ssub.s32 %s9, 1
    %s15 = ssub.s32 %s9, 2
    %s16 = sadd.s32 %s9, 1
    %s17 = ssub.s32 %s9, %s16
    %p18 = scmp.eq.s32.totalorder %s17, 0
    %s20 = sadd.s32 %s19, 1
    %s21 = scalar_select %p18, %s19, %s20
    %p24 = pneg %p18
    %p25 = scmp.eq.s32.totalorder %s9, 1
    %p26 = por %p24, %p25
    %p27 = scmp.ne.s32.totalorder %s19, %s22
    %p28 = scmp.eq.s32.totalorder %s9, 0
    %p29 = por %p27, %p28
    %p30 = scmp.ne.s32.totalorder %s19, %s22
    %p31 = scmp.eq.s32.totalorder %s14, 1
    %p32 = por %p30, %p31
    %p33 = scmp.ne.s32.totalorder %s22, %s23
    %p34 = scmp.eq.s32.totalorder %s14, 0
    %p35 = por %p33, %p34
    %p36 = scmp.ne.s32.totalorder %s22, %s23
    %p37 = scmp.eq.s32.totalorder %s15, 1
    %p38 = por %p36, %p37
    %p40 = scmp.ne.s32.totalorder %s23, %s39
    %p41 = scmp.eq.s32.totalorder %s15, 0
    %p42 = por %p40, %p41
    %s44 = sadd.s32 %s43, 1
    %p47 = scmp.eq.s32.totalorder %s9, 1
    %p48 = scmp.ne.s32.totalorder %s43, %s45
    %p49 = scmp.eq.s32.totalorder %s9, 0
    %p50 = por %p48, %p49
    %p51 = scmp.ne.s32.totalorder %s43, %s45
    %p52 = scmp.eq.s32.totalorder %s14, 1
    %p53 = por %p51, %p52
    %p54 = scmp.ne.s32.totalorder %s45, %s46
    %p55 = scmp.eq.s32.totalorder %s14, 0
    %p56 = por %p54, %p55
    %p57 = scmp.ne.s32.totalorder %s45, %s46
    %p58 = scmp.eq.s32.totalorder %s15, 1
    %p59 = por %p57, %p58
    %p61 = scmp.ne.s32.totalorder %s46, %s60
    %p62 = scmp.eq.s32.totalorder %s15, 0
    %p63 = por %p61, %p62
    %s65 = sadd.s32 %s64, 1
    %p68 = scmp.eq.s32.totalorder %s9, 1
    %p69 = scmp.ne.s32.totalorder %s64, %s66
    %p70 = scmp.eq.s32.totalorder %s9, 0
    %p71 = por %p69, %p70
    %p72 = scmp.ne.s32.totalorder %s64, %s66
    %p73 = scmp.eq.s32.totalorder %s14, 1
    %p74 = por %p72, %p73
    %p75 = scmp.ne.s32.totalorder %s66, %s67
    %p76 = scmp.eq.s32.totalorder %s14, 0
    %p77 = por %p75, %p76
    %p78 = scmp.ne.s32.totalorder %s66, %s67
    %p79 = scmp.eq.s32.totalorder %s15, 1
    %p80 = por %p78, %p79
    %p82 = scmp.ne.s32.totalorder %s67, %s81
    %p83 = scmp.eq.s32.totalorder %s15, 0
    %p84 = por %p82, %p83
    %s85 = ssub.s32 %s9, %s16
    %p86 = scmp.eq.s32.totalorder %s85, 0
    %s88 = sadd.s32 %s87, 1
    %s89 = scalar_select %p86, %s87, %s88
    %p92 = pneg %p86
    %p93 = scmp.eq.s32.totalorder %s9, 1
    %p94 = por %p92, %p93
    %p95 = scmp.ne.s32.totalorder %s87, %s90
    %p96 = scmp.eq.s32.totalorder %s9, 0
    %p97 = por %p95, %p96
    %p98 = scmp.ne.s32.totalorder %s87, %s90
    %p99 = scmp.eq.s32.totalorder %s14, 1
    %p100 = por %p98, %p99
    %p101 = scmp.ne.s32.totalorder %s90, %s91
    %p102 = scmp.eq.s32.totalorder %s14, 0
    %p103 = por %p101, %p102
    %p104 = scmp.ne.s32.totalorder %s90, %s91
    %p105 = scmp.eq.s32.totalorder %s15, 1
    %p106 = por %p104, %p105
    %p108 = scmp.ne.s32.totalorder %s91, %s107
    %p109 = scmp.eq.s32.totalorder %s15, 0
    %p110 = por %p108, %p109
    %p111 = scmp.le.s32.totalorder 1, %s9
    %p112 = scmp.lt.s32.totalorder %s9, 3
    %p113 = pnand %p111, %p112
    %p114 = pneg %p113
    // Predicated region
    $region9: #{tpu_custom_call.1} parent=5 // pred_check
      _
    $region10: #{tpu_custom_call.1} parent=5 // pred_check_branch
      %116 = sbr.rel (%p113) target = $region12
    $region11: #{tpu_custom_call.1} parent=5 // pred_region
      %s117 = ssub.s32 %s9, 1
      // Predicated region
      $region13: #{tpu_custom_call.1} parent=11 // pred_check
        %p118 = pneg %p56
      $region14: #{tpu_custom_call.1} parent=11 // pred_check_branch
        %120 = sbr.rel (%p118) target = $region16
      $region15: #{tpu_custom_call.1} parent=11 // pred_region
        _
      $region16: #{tpu_custom_call.1} parent=11 // pred_fallthru
        _
      // Predicated region
      $region17: #{tpu_custom_call.1} parent=11 // pred_check
        %p121 = pneg %p77
      $region18: #{tpu_custom_call.1} parent=11 // pred_check_branch
        %123 = sbr.rel (%p121) target = $region20
      $region19: #{tpu_custom_call.1} parent=11 // pred_region
        _
      $region20: #{tpu_custom_call.1} parent=11 // pred_fallthru
        _
    $region12: #{tpu_custom_call.1} parent=5 // pred_fallthru
      _
    %p124 = scmp.lt.s32.totalorder %s9, 2
    // Predicated region
    $region21: #{tpu_custom_call.1} parent=5 // pred_check
      %p125 = pneg %p124
    $region22: #{tpu_custom_call.1} parent=5 // pred_check_branch
      %127 = sbr.rel (%p125) target = $region24
    $region23: #{tpu_custom_call.1} parent=5 // pred_region
      // Predicated region
      $region25: #{tpu_custom_call.1} parent=23 // pred_check
        %p128 = pneg %p29
      $region26: #{tpu_custom_call.1} parent=23 // pred_check_branch
        %130 = sbr.rel (%p128) target = $region28
      $region27: #{tpu_custom_call.1} parent=23 // pred_region
        %p131 = scmp.lt.s32.totalorder %s9, 1
        %s132 = scalar_select %p131, %s9, 1
        %s133 = smul.addr %s132, 4
        %s134 = smul.addr %s133, 8
        %s135 = scalar_lea.vmem %s0, %s134
      $region28: #{tpu_custom_call.1} parent=23 // pred_fallthru
        _
    $region24: #{tpu_custom_call.1} parent=5 // pred_fallthru
      _
    %p136 = scmp.le.s32.totalorder 1, %s9
    %p137 = scmp.lt.s32.totalorder %s9, 3
    %p138 = pnand %p136, %p137
    %p139 = pneg %p138
    // Predicated region
    $region29: #{tpu_custom_call.1} parent=5 // pred_check
      _
    $region30: #{tpu_custom_call.1} parent=5 // pred_check_branch
      %141 = sbr.rel (%p138) target = $region32
    $region31: #{tpu_custom_call.1} parent=5 // pred_region
      %s142 = ssub.s32 %s9, 1
      %p143 = scmp.lt.s32.totalorder %s14, 1
      %s144 = scalar_select %p143, %s14, 1
      %s145 = smul.addr %s144, 4
      %s146 = smul.addr %s145, 8
      %s147 = scalar_lea.vmem %s0, %s146
      %p148 = pneg %p35
      %p149 = pneg %p32
      %p150 = pneg %p56
      %p151 = pneg %p53
      %p152 = pneg %p77
      %p153 = pneg %p74
      %p154 = pneg %p103
      %p155 = pneg %p100
      %p156 = scmp.lt.s32.totalorder %s14, 1
      %s157 = scalar_select %p156, %s14, 1
      %s158 = smul.addr %s157, 4
      %s159 = smul.addr %s158, 4
      %s160 = scalar_lea.vmem %s3, %s159
      %p161 = scmp.lt.s32.totalorder %s14, 1
      %s162 = scalar_select %p161, %s14, 1
      %s163 = smul.addr %s162, 4
      %s164 = smul.addr %s163, 8
      %s165 = scalar_lea.vmem %s0, %s164
      %p166 = scmp.lt.s32.totalorder %s14, 1
      %s167 = scalar_select %p166, %s14, 1
      %s168 = smul.addr %s167, 4
      %s169 = smul.addr %s168, 4
      %s170 = scalar_lea.vmem %s3, %s169
      %v172 = vld [vmem:[%s165] sm:$0xff]
      %v173 = vld [vmem:[%s165 + $0x8] sm:$0xff]
      %v174 = vld [vmem:[%s165 + $0x10] sm:$0xff]
      %v175 = vld [vmem:[%s165 + $0x18] sm:$0xff]
      %vm176 = vcmask 130048
      %v177 = vsel %vm176, %v172, 0.0
      %178 = vadd.xlane.f32.xlu0 %v177
      %v179 = vpop.xlane.xlu0 %178
      %v180 = vsel %vm176, %v173, 0.0
      %181 = vadd.xlane.f32.xlu0 %v180
      %v182 = vpop.xlane.xlu0 %181
      %v183 = vsel %vm176, %v174, 0.0
      %184 = vadd.xlane.f32.xlu0 %v183
      %v185 = vpop.xlane.xlu0 %184
      %v186 = vsel %vm176, %v175, 0.0
      %187 = vadd.xlane.f32.xlu0 %v186
      %v188 = vpop.xlane.xlu0 %187
      %v189 = vmul.f32 %v179, 0.0625
      %v190 = vmul.f32 %v182, 0.0625
      %v191 = vmul.f32 %v185, 0.0625
      %v192 = vmul.f32 %v188, 0.0625
      %v193 = vsub.f32 %v172, %v189
      %v194 = vsub.f32 %v173, %v190
      %v195 = vsub.f32 %v174, %v191
      %v196 = vsub.f32 %v175, %v192
      %v197 = vmul.f32 %v193, %v193
      %v198 = vmul.f32 %v194, %v194
      %v199 = vmul.f32 %v195, %v195
      %v200 = vmul.f32 %v196, %v196
      %v201 = vsel %vm176, %v197, 0.0
      %202 = vadd.xlane.f32.xlu0 %v201
      %v203 = vpop.xlane.xlu0 %202
      %v204 = vsel %vm176, %v198, 0.0
      %205 = vadd.xlane.f32.xlu0 %v204
      %v206 = vpop.xlane.xlu0 %205
      %v207 = vsel %vm176, %v199, 0.0
      %208 = vadd.xlane.f32.xlu0 %v207
      %v209 = vpop.xlane.xlu0 %208
      %v210 = vsel %vm176, %v200, 0.0
      %211 = vadd.xlane.f32.xlu0 %v210
      %v212 = vpop.xlane.xlu0 %211
      %v213 = vmul.f32 %v203, 0.0625
      %v214 = vmul.f32 %v206, 0.0625
      %v215 = vmul.f32 %v209, 0.0625
      %v216 = vmul.f32 %v212, 0.0625
      %v217 = vadd.f32 %v213, 1e-05
      %v218 = vadd.f32 %v214, 1e-05
      %v219 = vadd.f32 %v215, 1e-05
      %v220 = vadd.f32 %v216, 1e-05
      %v221 = vrsqrt.pop %v217
      %v222 = vmul.f32 %v221, %v217
      %v223 = vmul.f32 %v222, %v221
      %v224 = vmul.f32 0.5, %v223
      %v225 = vsub.f32 1.5, %v224
      %v226 = vmul.f32 %v221, %v225
      %vm227 = vweird.f32 %v217
      %vm228 = vweird.f32 %v221
      %vm229 = vmor %vm227, %vm228
      %v230 = vsel %vm229, %v221, %v226
      %v231 = vrsqrt.pop %v218
      %v232 = vmul.f32 %v231, %v218
      %v233 = vmul.f32 %v232, %v231
      %v234 = vmul.f32 0.5, %v233
      %v235 = vsub.f32 1.5, %v234
      %v236 = vmul.f32 %v231, %v235
      %vm237 = vweird.f32 %v218
      %vm238 = vweird.f32 %v231
      %vm239 = vmor %vm237, %vm238
      %v240 = vsel %vm239, %v231, %v236
      %v241 = vrsqrt.pop %v219
      %v242 = vmul.f32 %v241, %v219
      %v243 = vmul.f32 %v242, %v241
      %v244 = vmul.f32 0.5, %v243
      %v245 = vsub.f32 1.5, %v244
      %v246 = vmul.f32 %v241, %v245
      %vm247 = vweird.f32 %v219
      %vm248 = vweird.f32 %v241
      %vm249 = vmor %vm247, %vm248
      %v250 = vsel %vm249, %v241, %v246
      %v251 = vrsqrt.pop %v220
      %v252 = vmul.f32 %v251, %v220
      %v253 = vmul.f32 %v252, %v251
      %v254 = vmul.f32 0.5, %v253
      %v255 = vsub.f32 1.5, %v254
      %v256 = vmul.f32 %v251, %v255
      %vm257 = vweird.f32 %v220
      %vm258 = vweird.f32 %v251
      %vm259 = vmor %vm257, %vm258
      %v260 = vsel %vm259, %v251, %v256
      %v261 = vmul.f32 %v193, %v230
      %v262 = vmul.f32 %v194, %v240
      %v263 = vmul.f32 %v195, %v250
      %v264 = vmul.f32 %v196, %v260
      %vm265 = vcmp.ge.f32.partialorder %v261, 0.0
      %vm266 = vcmp.ge.f32.partialorder %v262, 0.0
      %vm267 = vcmp.ge.f32.partialorder %v263, 0.0
      %vm268 = vcmp.ge.f32.partialorder %v264, 0.0
      %v269 = vmul.f32 %v261, 0.2
      %v270 = vmul.f32 %v262, 0.2
      %v271 = vmul.f32 %v263, 0.2
      %v272 = vmul.f32 %v264, 0.2
      %v273 = vsel %vm265, %v261, %v269
      %v274 = vsel %vm266, %v262, %v270
      %v275 = vsel %vm267, %v263, %v271
      %v276 = vsel %vm268, %v264, %v272
      %281 = vrot.lane.b32.xlu0 %v273, 1
      %v282 = vpop.permute.xlu0 %281
      %283 = vrot.lane.b32.xlu0 %v274, 1
      %v284 = vpop.permute.xlu0 %283
      %285 = vrot.lane.b32.xlu0 %v275, 1
      %v286 = vpop.permute.xlu0 %285
      %287 = vrot.lane.b32.xlu0 %v276, 1
      %v288 = vpop.permute.xlu0 %287
      %vm293 = vcmask 7168
      %v294 = vsel %vm293, 0.0, %v282
      %v295 = vsel %vm293, 0.0, %v284
      %v296 = vsel %vm293, 0.0, %v286
      %v297 = vsel %vm293, 0.0, %v288
      %vm298 = vcmask 138240
      %v299 = vsel %vm298, %v294, 0.0
      %v300 = vsel %vm298, %v295, 0.0
      %v301 = vsel %vm298, %v296, 0.0
      %v302 = vsel %vm298, %v297, 0.0
      %307 = vrot.lane.b32.xlu0 %v299, 127
      %v308 = vpop.permute.xlu0 %307
      %309 = vrot.lane.b32.xlu0 %v300, 127
      %v310 = vpop.permute.xlu0 %309
      %311 = vrot.lane.b32.xlu0 %v301, 127
      %v312 = vpop.permute.xlu0 %311
      %313 = vrot.lane.b32.xlu0 %v302, 127
      %v314 = vpop.permute.xlu0 %313
      %319 = vrot.lane.b32.xlu0 %v299, 126
      %v320 = vpop.permute.xlu0 %319
      %321 = vrot.lane.b32.xlu0 %v300, 126
      %v322 = vpop.permute.xlu0 %321
      %323 = vrot.lane.b32.xlu0 %v301, 126
      %v324 = vpop.permute.xlu0 %323
      %325 = vrot.lane.b32.xlu0 %v302, 126
      %v326 = vpop.permute.xlu0 %325
      %v331 = vld [vmem:[%s1] sm:$0xf]
      %v332 = vld [vmem:[%s1 + $0x4] sm:$0xf]
      %v333 = vld [vmem:[%s1 + $0x8] sm:$0xf]
      %v334 = vld [vmem:[%s1 + $0xc] sm:$0xf]
      %v335 = vpack.c.bf16 %v300, %v299
      %v336 = vpack.c.bf16 %v302, %v301
      %v337 = vpack.c.bf16 %v310, %v308
      %v338 = vpack.c.bf16 %v314, %v312
      %v339 = vpack.c.bf16 %v322, %v320
      %v340 = vpack.c.bf16 %v326, %v324
      %v341 = vld [vmem:[%s2] sm:$0xff]
      %v342 = vld [vmem:[%s2 + $0x8] sm:$0xff]
      %v343 = vld [vmem:[%s2 + $0x10] sm:$0xff]
      %v344 = vld [vmem:[%s2 + $0x18] sm:$0xff]
      %346 = vset.pattern.permute.xlu0 0
      %347 = vperm.xlu0 %346, %v341
      %v348 = vpop.permute.xlu0 %347
      %351 = vset.pattern.permute.xlu0 0
      %352 = vperm.xlu0 %351, %v342
      %v353 = vpop.permute.xlu0 %352
      %356 = vset.pattern.permute.xlu0 0
      %357 = vperm.xlu0 %356, %v343
      %v358 = vpop.permute.xlu0 %357
      %361 = vset.pattern.permute.xlu0 0
      %362 = vperm.xlu0 %361, %v344
      %v363 = vpop.permute.xlu0 %362
      %v369 = vunpack.c.l.b16 %v331
      %v370 = vunpack.c.l.b16 %v332
      %v371 = vunpack.c.l.b16 %v333
      %v372 = vunpack.c.l.b16 %v334
      %v373 = vpack.c.b16 %v370, %v369
      %v374 = vpack.c.b16 %v372, %v371
      %vm375 = vcmask 785408
      %v377 = vsel %vm375, %v373, 0
      %v380 = vsel %vm375, %v374, 0
      %382 = vmatpush.bf16.msra.mxu0 0
      %383 = vmatpush.bf16.msra.mxu0 0
      %384 = vmatpush.bf16.msra.mxu0 %v340
      %385 = vmatpush.bf16.msra.mxu0 %v339
      %386 = vmatpush.bf16.msra.mxu0 %v338
      %387 = vmatpush.bf16.msra.mxu0 %v337
      %388 = vmatpush.bf16.msra.mxu0 %v336
      %389 = vmatpush.bf16.msra.mxu0 %v335
      %390 = vmatmul.bf16.gmra.mxu0 %v377
      %v391 = vpop.f32.mrf.mxu0
      %v392 = vadd.f32 %v348, %v391
      %v393 = vpop.f32.mrf.mxu0
      %v394 = vadd.f32 %v353, %v393
      %395 = vmatmul.bf16.gmra.mxu0 %v380
      %v396 = vpop.f32.mrf.mxu0
      %v397 = vadd.f32 %v358, %v396
      %v398 = vpop.f32.mrf.mxu0
      %v399 = vadd.f32 %v363, %v398
      %400 = vdwg.mxu0
      %v401 = vpack.c.bf16 %v392, %v392
      %v402 = vpack.c.bf16 %v394, %v394
      %v403 = vpack.c.bf16 %v397, %v397
      %v404 = vpack.c.bf16 %v399, %v399
      %vm405 = vcmask 125952
      %406 = vst.msk [vmem:[%s170] sm:$0xf] %vm405, %v401
      %407 = vst.msk [vmem:[%s170 + $0x4] sm:$0xf] %vm405, %v402
      %408 = vst.msk [vmem:[%s170 + $0x8] sm:$0xf] %vm405, %v403
      %409 = vst.msk [vmem:[%s170 + $0xc] sm:$0xf] %vm405, %v404
      %p410 = scmp.lt.s32.totalorder %s14, 1
      %s411 = scalar_select %p410, %s14, 1
      %s412 = smul.addr %s411, 4
      %s413 = smul.addr %s412, 4
      %s414 = scalar_lea.vmem %s3, %s413
      // Predicated region
      $region33: #{tpu_custom_call.1} parent=31 // pred_check
        %p415 = pneg %p100
      $region34: #{tpu_custom_call.1} parent=31 // pred_check_branch
        %417 = sbr.rel (%p415) target = $region36
      $region35: #{tpu_custom_call.1} parent=31 // pred_region
        _
      $region36: #{tpu_custom_call.1} parent=31 // pred_fallthru
        _
    $region32: #{tpu_custom_call.1} parent=5 // pred_fallthru
      _
    %p418 = scmp.le.s32.totalorder 2, %s9
    // Predicated region
    $region37: #{tpu_custom_call.1} parent=5 // pred_check
      %p419 = pneg %p418
    $region38: #{tpu_custom_call.1} parent=5 // pred_check_branch
      %421 = sbr.rel (%p419) target = $region40
    $region39: #{tpu_custom_call.1} parent=5 // pred_region
      %s422 = ssub.s32 %s9, 2
      // Predicated region
      $region41: #{tpu_custom_call.1} parent=39 // pred_check
        %p423 = pneg %p106
      $region42: #{tpu_custom_call.1} parent=39 // pred_check_branch
        %425 = sbr.rel (%p423) target = $region44
      $region43: #{tpu_custom_call.1} parent=39 // pred_region
        %p426 = scmp.lt.s32.totalorder %s15, 1
        %s427 = scalar_select %p426, %s15, 1
        %s428 = smul.addr %s427, 4
        %s429 = smul.addr %s428, 4
        %s430 = scalar_lea.vmem %s3, %s429
      $region44: #{tpu_custom_call.1} parent=39 // pred_fallthru
        _
    $region40: #{tpu_custom_call.1} parent=5 // pred_fallthru
      _
  $region6: #{tpu_custom_call.1} parent=0 // loop_footer
    %s13 = sadd.s32 1, %s9
  $region7: #{tpu_custom_call.1} parent=0 // loop_footer_branch
    %8 = sbr.rel target = $region3
  $region8: #{tpu_custom_call.1} parent=0 // loop_exit
    _

</llo_original>
